<compile_context>
chip_gen: v7x
topology: tpu7x:2x2x1
jax: 0.10.0
libtpu: 0.0.40
codegen_flags: <defaults>
</compile_context>

<pallas_src>
import jax
import jax.numpy as jnp
import numpy as np
from jax.experimental import pallas as pl
from jax.experimental.pallas import tpu as pltpu


# ----------------------------------------------------------------------------
# Pallas kernel: one tile of TR points (rows) per grid step, channel-last.
# ----------------------------------------------------------------------------
def _upsampling_kernel(x_ref,            # (TR, 128)  point features
                       w1_ref, b1_ref,   # (128, 64), (1, 64)    mlp_1 conv1
                       wd_ref, bd_ref,   # (64, 256), (1, 256)   mlp_1 conv2 folded into both deconv taps
                       wx_ref, bx_ref,   # (128, 256), (1, 256)  x-side of [shortcut | conv_1] (+ bs+bc2 | bc1)
                       wdd_ref,          # (128, 256)            d-side of [shortcut | conv_1]
                       wc2_ref,          # (128, 128)            MLP_Res conv_2 (bias folded into bx)
                       out_ref):         # (TR, 256) = [even-point feat | odd-point feat]
    f32 = jnp.float32
    x = x_ref[...]

    # mlp_1: Conv1d(128->64) + ReLU (its second conv is folded into the deconv weights).
    h1 = jnp.maximum(
        jnp.dot(x, w1_ref[...], preferred_element_type=f32) + b1_ref[...], 0.0)

    # Both ConvTranspose1d(32,128,k=2,s=2) taps at once: (TR, 256) = [d0 | d1].
    d_all = jnp.dot(h1, wd_ref[...], preferred_element_type=f32) + bd_ref[...]

    # x-dependent halves of MLP_Res shortcut / conv_1 (shared by both taps).
    # bx = [bs + bc2 | bc1] so no bias adds remain inside the tap loop.
    x_side = jnp.dot(x, wx_ref[...], preferred_element_type=f32) + bx_ref[...]
    xs_short = x_side[:, :128]
    xs_hid = x_side[:, 128:]

    wdd = wdd_ref[...]
    wc2 = wc2_ref[...]

    for k in range(2):                                     # static unroll: tap 0 / tap 1
        d = d_all[:, 128 * k:128 * (k + 1)]                # (TR, 128) lane-aligned slice
        ds = jnp.dot(d, wdd, preferred_element_type=f32)   # (TR, 256) = [shortcut_d | hidden_d]
        shortcut = ds[:, :128] + xs_short
        h = jnp.maximum(ds[:, 128:] + xs_hid, 0.0)
        out = jnp.maximum(
            jnp.dot(h, wc2, preferred_element_type=f32) + shortcut, 0.0)
        out_ref[:, 128 * k:128 * (k + 1)] = out.astype(out_ref.dtype)


# ----------------------------------------------------------------------------
# Host-side (trace-time) weight fusion.  All 1x1-conv weights stored as (in, out).
# ----------------------------------------------------------------------------
def _fuse_params(p):
    wd_cat = jnp.concatenate([p["wd0"], p["wd1"]], axis=1)            # (32, 256)
    wd = jnp.dot(p["w2"], wd_cat)                                     # (64, 256)  mlp_1 conv2 folded in
    bd = jnp.dot(p["b2"], wd_cat)                                     # (1, 256)
    wdd = jnp.concatenate([p["ws"][:128], p["wc1"][:128]], axis=1)    # (128, 256) d-side
    wx = jnp.concatenate([p["ws"][128:], p["wc1"][128:]], axis=1)     # (128, 256) x-side
    bx = jnp.concatenate([p["bs"] + p["bc2"], p["bc1"]], axis=1)      # (1, 256)  bc2 folded into shortcut bias
    return (p["w1"], p["b1"], wd, bd, wx, bx, wdd, p["wc2"])


def _round_up(x, m):
    return ((x + m - 1) // m) * m


# ----------------------------------------------------------------------------
# Channel-last entry point (no layout transposes at all).
# ----------------------------------------------------------------------------
def upsampling_unit_nlc(x_nlc, params, *, row_tile=512):
    """x_nlc: (B, N, 128) f32  ->  up_feat_nlc: (B, 2N, 128) f32."""
    B, N, C = x_nlc.shape
    assert C == 128
    rows = B * N

    row_tile = max(8, (row_tile // 8) * 8)                 # keep the sublane tile 8-aligned
    tr = min(row_tile, _round_up(rows, 8))
    rows_p = _round_up(rows, tr)

    x_rows = x_nlc.reshape(rows, C)                        # free view
    if rows_p != rows:
        x_rows = jnp.pad(x_rows, ((0, rows_p - rows), (0, 0)))

    fused = _fuse_params(params)
    weight_specs = [pl.BlockSpec(w.shape, lambda r: (0, 0)) for w in fused]

    out = pl.pallas_call(
        _upsampling_kernel,
        out_shape=jax.ShapeDtypeStruct((rows_p, 256), jnp.float32),
        grid_spec=pltpu.PrefetchScalarGridSpec(
            num_scalar_prefetch=0,
            grid=(rows_p // tr,),
            in_specs=[pl.BlockSpec((tr, 128), lambda r: (r, 0))] + weight_specs,
            out_specs=pl.BlockSpec((tr, 256), lambda r: (r, 0)),
        ),
        compiler_params=pltpu.CompilerParams(dimension_semantics=("parallel",)),
    )(x_rows, *fused)

    if rows_p != rows:
        out = out[:rows]
    # (rows, 256) row-major == (B, N, 2, 128) == interleaved (B, 2N, 128): free view.
    return out.reshape(B, 2 * N, 128)


# ----------------------------------------------------------------------------
# PyTorch-layout wrapper (NCL in / NCL out), matching UpSamplingUnit.forward.
# ----------------------------------------------------------------------------
def upsampling_unit(point_feat, points, params, *, row_tile=512):
    """point_feat: (B, 128, N); points: (B, 3, N)
       -> up_feat (B, 128, 2N), duplicated_point (B, 3, 2N)."""
    x_nlc = jnp.transpose(point_feat, (0, 2, 1))           # one HBM pass (NCL -> NLC)
    up_nlc = upsampling_unit_nlc(x_nlc, params, row_tile=row_tile)
    up_feat = jnp.transpose(up_nlc, (0, 2, 1))             # one HBM pass (NLC -> NCL)
    duplicated_point = jnp.repeat(points, 2, axis=-1)      # nn.Upsample(scale_factor=2, nearest)
    return up_feat, duplicated_point, up_nlc


# ----------------------------------------------------------------------------
# up_unit (Pallas) + regressor + tanh residual  (SubNetwork.forward, post extractor).
# ----------------------------------------------------------------------------
def subnetwork_up_stage(point_feat, points, params, *, row_tile=512):
    up_feat, duplicated_point, up_nlc = upsampling_unit(
        point_feat, points, params, row_tile=row_tile)
    # regressor: Conv1d(128->64) + ReLU + Conv1d(64->3), channel-last (plain JAX).
    h = jax.nn.relu(jnp.einsum("bnc,cd->bnd", up_nlc, params["wr1"]) + params["br1"])
    offset = jnp.einsum("bnd,de->bne", h, params["wr2"]) + params["br2"]   # (B, 2N, 3)
    up_point = duplicated_point + jnp.tanh(jnp.transpose(offset, (0, 2, 1)))
    return up_feat, duplicated_point, up_point


# ----------------------------------------------------------------------------
# Pure-JAX reference (unfused math, same weights) for correctness check.
# ----------------------------------------------------------------------------
def reference_forward(point_feat, points, p):
    B, _, N = point_feat.shape
    x = jnp.transpose(point_feat, (0, 2, 1))               # (B, N, 128)
    h1 = jax.nn.relu(x @ p["w1"] + p["b1"])
    h2 = h1 @ p["w2"] + p["b2"]
    d0 = h2 @ p["wd0"]
    d1 = h2 @ p["wd1"]
    deconv = jnp.stack([d0, d1], axis=2).reshape(B, 2 * N, 128)
    dup = jnp.repeat(x, 2, axis=1)
    cat = jnp.concatenate([deconv, dup], axis=-1)          # (B, 2N, 256)
    shortcut = cat @ p["ws"] + p["bs"]
    h = jax.nn.relu(cat @ p["wc1"] + p["bc1"])
    up = jax.nn.relu(h @ p["wc2"] + p["bc2"] + shortcut)   # (B, 2N, 128)
    up_feat = jnp.transpose(up, (0, 2, 1))
    dup_pt = jnp.repeat(points, 2, axis=-1)
    hr = jax.nn.relu(up @ p["wr1"] + p["br1"])
    off = hr @ p["wr2"] + p["br2"]
    up_point = dup_pt + jnp.tanh(jnp.transpose(off, (0, 2, 1)))
    return up_feat, dup_pt, up_point


def init_params(key):
    """Deterministic synthetic weights.  All 1x1-conv weights are stored
    pre-transposed as (in, out) so y = x @ W + b."""
    ks = jax.random.split(key, 16)
    s = 0.05
    return {
        "w1":  s * jax.random.normal(ks[0],  (128, 64),  jnp.float32),
        "b1":  s * jax.random.normal(ks[1],  (1, 64),    jnp.float32),
        "w2":  s * jax.random.normal(ks[2],  (64, 32),   jnp.float32),
        "b2":  s * jax.random.normal(ks[3],  (1, 32),    jnp.float32),
        # ConvTranspose1d(32, 128, k=2, s=2, bias=False): weight (32, 128, 2) -> per-tap (32, 128)
        "wd0": s * jax.random.normal(ks[4],  (32, 128),  jnp.float32),
        "wd1": s * jax.random.normal(ks[5],  (32, 128),  jnp.float32),
        "ws":  s * jax.random.normal(ks[6],  (256, 128), jnp.float32),
        "bs":  s * jax.random.normal(ks[7],  (1, 128),   jnp.float32),
        "wc1": s * jax.random.normal(ks[8],  (256, 128), jnp.float32),
        "bc1": s * jax.random.normal(ks[9],  (1, 128),   jnp.float32),
        "wc2": s * jax.random.normal(ks[10], (128, 128), jnp.float32),
        "bc2": s * jax.random.normal(ks[11], (1, 128),   jnp.float32),
        # regressor MLP_CONV(128 -> [64, 3])
        "wr1": s * jax.random.normal(ks[12], (128, 64),  jnp.float32),
        "br1": s * jax.random.normal(ks[13], (1, 64),    jnp.float32),
        "wr2": s * jax.random.normal(ks[14], (64, 3),    jnp.float32),
        "br2": s * jax.random.normal(ks[15], (1, 3),     jnp.float32),
    }


if __name__ == "__main__":
    key = jax.random.PRNGKey(0)
    kx, kp, kw = jax.random.split(key, 3)

    B, N = 2, 16
    point_feat = jax.random.normal(kx, (B, 128, N), jnp.float32)
    points = jax.random.normal(kp, (B, 3, N), jnp.float32)
    params = init_params(kw)

    fn = jax.jit(subnetwork_up_stage)
    up_feat, dup_pt, up_point = jax.block_until_ready(fn(point_feat, points, params))

    ref_up, ref_dup, ref_pt = reference_forward(point_feat, points, params)
    np.testing.assert_allclose(np.asarray(up_feat), np.asarray(ref_up),
                               rtol=1e-5, atol=1e-5)
    np.testing.assert_allclose(np.asarray(dup_pt), np.asarray(ref_dup),
                               rtol=1e-6, atol=1e-6)
    np.testing.assert_allclose(np.asarray(up_point), np.asarray(ref_pt),
                               rtol=1e-5, atol=1e-5)

    assert up_feat.shape == (B, 128, 2 * N)
    assert dup_pt.shape == (B, 3, 2 * N)
    assert up_point.shape == (B, 3, 2 * N)
    print("KERNEL_OK")
</pallas_src>

<mosaic_0001>
module attributes {stable_mosaic.version = 11 : i64} {
  func.func @_upsampling_kernel(%arg0: i32, %arg1: memref<32x128xf32, #tpu.memory_space<vmem>>, %arg2: memref<128x64xf32, #tpu.memory_space<vmem>>, %arg3: memref<1x64xf32, #tpu.memory_space<vmem>>, %arg4: memref<64x256xf32, #tpu.memory_space<vmem>>, %arg5: memref<1x256xf32, #tpu.memory_space<vmem>>, %arg6: memref<128x256xf32, #tpu.memory_space<vmem>>, %arg7: memref<1x256xf32, #tpu.memory_space<vmem>>, %arg8: memref<128x256xf32, #tpu.memory_space<vmem>>, %arg9: memref<128x128xf32, #tpu.memory_space<vmem>>, %arg10: memref<32x256xf32, #tpu.memory_space<vmem>>) attributes {dimension_semantics = [#tpu.dimension_semantics<parallel>], iteration_bounds = array<i64: 1>, scalar_prefetch = 0 : i64, scratch_operands = 0 : i64, tpu.core_type = #tpu.core_type<tc>, window_params = [{transform_indices = @transform_0, window_bounds = array<i64: 32, 128>}, {pipeline_mode = #tpu.pipeline_mode<synchronous>, transform_indices = @transform_1, window_bounds = array<i64: 128, 64>}, {pipeline_mode = #tpu.pipeline_mode<synchronous>, transform_indices = @transform_2, window_bounds = array<i64: 1, 64>}, {pipeline_mode = #tpu.pipeline_mode<synchronous>, transform_indices = @transform_3, window_bounds = array<i64: 64, 256>}, {pipeline_mode = #tpu.pipeline_mode<synchronous>, transform_indices = @transform_4, window_bounds = array<i64: 1, 256>}, {pipeline_mode = #tpu.pipeline_mode<synchronous>, transform_indices = @transform_5, window_bounds = array<i64: 128, 256>}, {pipeline_mode = #tpu.pipeline_mode<synchronous>, transform_indices = @transform_6, window_bounds = array<i64: 1, 256>}, {pipeline_mode = #tpu.pipeline_mode<synchronous>, transform_indices = @transform_7, window_bounds = array<i64: 128, 256>}, {pipeline_mode = #tpu.pipeline_mode<synchronous>, transform_indices = @transform_8, window_bounds = array<i64: 128, 128>}, {transform_indices = @transform_9, window_bounds = array<i64: 32, 256>}]} {
    %c0 = arith.constant 0 : index
    %c0_0 = arith.constant 0 : index
    %0 = vector.load %arg1[%c0, %c0_0] : memref<32x128xf32, #tpu.memory_space<vmem>>, vector<32x128xf32>
    %c0_1 = arith.constant 0 : index
    %c0_2 = arith.constant 0 : index
    %1 = vector.load %arg2[%c0_1, %c0_2] : memref<128x64xf32, #tpu.memory_space<vmem>>, vector<128x64xf32>
    %cst = arith.constant dense<0.000000e+00> : vector<32x64xf32>
    %2 = tpu.matmul %0, %1, %cst {dimension_numbers = #tpu.dot_dimension_numbers<[1], [0], [0], [1], [0, 0, 1, 1], [], []>} : vector<32x128xf32>, vector<128x64xf32>, vector<32x64xf32> -> vector<32x64xf32>
    %c0_3 = arith.constant 0 : index
    %c0_4 = arith.constant 0 : index
    %3 = vector.load %arg3[%c0_3, %c0_4] : memref<1x64xf32, #tpu.memory_space<vmem>>, vector<1x64xf32>
    %4 = vector.broadcast %3 : vector<1x64xf32> to vector<32x64xf32>
    %5 = arith.addf %2, %4 : vector<32x64xf32>
    %cst_5 = arith.constant 0.000000e+00 : f32
    %6 = vector.broadcast %cst_5 : f32 to vector<32x64xf32>
    %7 = arith.maximumf %5, %6 : vector<32x64xf32>
    %c0_6 = arith.constant 0 : index
    %c0_7 = arith.constant 0 : index
    %8 = vector.load %arg4[%c0_6, %c0_7] : memref<64x256xf32, #tpu.memory_space<vmem>>, vector<64x256xf32>
    %cst_8 = arith.constant dense<0.000000e+00> : vector<32x256xf32>
    %9 = tpu.matmul %7, %8, %cst_8 {dimension_numbers = #tpu.dot_dimension_numbers<[1], [0], [0], [1], [0, 0, 1, 1], [], []>} : vector<32x64xf32>, vector<64x256xf32>, vector<32x256xf32> -> vector<32x256xf32>
    %c0_9 = arith.constant 0 : index
    %c0_10 = arith.constant 0 : index
    %10 = vector.load %arg5[%c0_9, %c0_10] : memref<1x256xf32, #tpu.memory_space<vmem>>, vector<1x256xf32>
    %11 = vector.broadcast %10 : vector<1x256xf32> to vector<32x256xf32>
    %12 = arith.addf %9, %11 : vector<32x256xf32>
    %c0_11 = arith.constant 0 : index
    %c0_12 = arith.constant 0 : index
    %13 = vector.load %arg6[%c0_11, %c0_12] : memref<128x256xf32, #tpu.memory_space<vmem>>, vector<128x256xf32>
    %cst_13 = arith.constant dense<0.000000e+00> : vector<32x256xf32>
    %14 = tpu.matmul %0, %13, %cst_13 {dimension_numbers = #tpu.dot_dimension_numbers<[1], [0], [0], [1], [0, 0, 1, 1], [], []>} : vector<32x128xf32>, vector<128x256xf32>, vector<32x256xf32> -> vector<32x256xf32>
    %c0_14 = arith.constant 0 : index
    %c0_15 = arith.constant 0 : index
    %15 = vector.load %arg7[%c0_14, %c0_15] : memref<1x256xf32, #tpu.memory_space<vmem>>, vector<1x256xf32>
    %16 = vector.broadcast %15 : vector<1x256xf32> to vector<32x256xf32>
    %17 = arith.addf %14, %16 : vector<32x256xf32>
    %18 = vector.extract_strided_slice %17 {offsets = [0, 0], sizes = [32, 128], strides = [1, 1]} : vector<32x256xf32> to vector<32x128xf32>
    %19 = vector.extract_strided_slice %17 {offsets = [0, 128], sizes = [32, 128], strides = [1, 1]} : vector<32x256xf32> to vector<32x128xf32>
    %c0_16 = arith.constant 0 : index
    %c0_17 = arith.constant 0 : index
    %20 = vector.load %arg8[%c0_16, %c0_17] : memref<128x256xf32, #tpu.memory_space<vmem>>, vector<128x256xf32>
    %c0_18 = arith.constant 0 : index
    %c0_19 = arith.constant 0 : index
    %21 = vector.load %arg9[%c0_18, %c0_19] : memref<128x128xf32, #tpu.memory_space<vmem>>, vector<128x128xf32>
    %22 = vector.extract_strided_slice %12 {offsets = [0, 0], sizes = [32, 128], strides = [1, 1]} : vector<32x256xf32> to vector<32x128xf32>
    %cst_20 = arith.constant dense<0.000000e+00> : vector<32x256xf32>
    %23 = tpu.matmul %22, %20, %cst_20 {dimension_numbers = #tpu.dot_dimension_numbers<[1], [0], [0], [1], [0, 0, 1, 1], [], []>} : vector<32x128xf32>, vector<128x256xf32>, vector<32x256xf32> -> vector<32x256xf32>
    %24 = vector.extract_strided_slice %23 {offsets = [0, 0], sizes = [32, 128], strides = [1, 1]} : vector<32x256xf32> to vector<32x128xf32>
    %25 = arith.addf %24, %18 : vector<32x128xf32>
    %26 = vector.extract_strided_slice %23 {offsets = [0, 128], sizes = [32, 128], strides = [1, 1]} : vector<32x256xf32> to vector<32x128xf32>
    %27 = arith.addf %26, %19 : vector<32x128xf32>
    %cst_21 = arith.constant 0.000000e+00 : f32
    %28 = vector.broadcast %cst_21 : f32 to vector<32x128xf32>
    %29 = arith.maximumf %27, %28 : vector<32x128xf32>
    %cst_22 = arith.constant dense<0.000000e+00> : vector<32x128xf32>
    %30 = tpu.matmul %29, %21, %cst_22 {dimension_numbers = #tpu.dot_dimension_numbers<[1], [0], [0], [1], [0, 0, 1, 1], [], []>} : vector<32x128xf32>, vector<128x128xf32>, vector<32x128xf32> -> vector<32x128xf32>
    %31 = arith.addf %30, %25 : vector<32x128xf32>
    %cst_23 = arith.constant 0.000000e+00 : f32
    %32 = vector.broadcast %cst_23 : f32 to vector<32x128xf32>
    %33 = arith.maximumf %31, %32 : vector<32x128xf32>
    %c0_24 = arith.constant 0 : index
    %c0_25 = arith.constant 0 : index
    %34 = vector.load %arg10[%c0_24, %c0_25] : memref<32x256xf32, #tpu.memory_space<vmem>>, vector<32x128xf32>
    tpu.vector_store %arg10[%c0_24, %c0_25], %33 {strides = array<i32>} : memref<32x256xf32, #tpu.memory_space<vmem>>, vector<32x128xf32>,
    %35 = vector.extract_strided_slice %12 {offsets = [0, 128], sizes = [32, 128], strides = [1, 1]} : vector<32x256xf32> to vector<32x128xf32>
    %cst_26 = arith.constant dense<0.000000e+00> : vector<32x256xf32>
    %36 = tpu.matmul %35, %20, %cst_26 {dimension_numbers = #tpu.dot_dimension_numbers<[1], [0], [0], [1], [0, 0, 1, 1], [], []>} : vector<32x128xf32>, vector<128x256xf32>, vector<32x256xf32> -> vector<32x256xf32>
    %37 = vector.extract_strided_slice %36 {offsets = [0, 0], sizes = [32, 128], strides = [1, 1]} : vector<32x256xf32> to vector<32x128xf32>
    %38 = arith.addf %37, %18 : vector<32x128xf32>
    %39 = vector.extract_strided_slice %36 {offsets = [0, 128], sizes = [32, 128], strides = [1, 1]} : vector<32x256xf32> to vector<32x128xf32>
    %40 = arith.addf %39, %19 : vector<32x128xf32>
    %cst_27 = arith.constant 0.000000e+00 : f32
    %41 = vector.broadcast %cst_27 : f32 to vector<32x128xf32>
    %42 = arith.maximumf %40, %41 : vector<32x128xf32>
    %cst_28 = arith.constant dense<0.000000e+00> : vector<32x128xf32>
    %43 = tpu.matmul %42, %21, %cst_28 {dimension_numbers = #tpu.dot_dimension_numbers<[1], [0], [0], [1], [0, 0, 1, 1], [], []>} : vector<32x128xf32>, vector<128x128xf32>, vector<32x128xf32> -> vector<32x128xf32>
    %44 = arith.addf %43, %38 : vector<32x128xf32>
    %cst_29 = arith.constant 0.000000e+00 : f32
    %45 = vector.broadcast %cst_29 : f32 to vector<32x128xf32>
    %46 = arith.maximumf %44, %45 : vector<32x128xf32>
    %c0_30 = arith.constant 0 : index
    %c128 = arith.constant 128 : index
    %47 = vector.load %arg10[%c0_30, %c128] : memref<32x256xf32, #tpu.memory_space<vmem>>, vector<32x128xf32>
    tpu.vector_store %arg10[%c0_30, %c128], %46 {strides = array<i32>} : memref<32x256xf32, #tpu.memory_space<vmem>>, vector<32x128xf32>,
    return
  }
  func.func @transform_0(%arg0: i32) -> (i32, i32) {
    %c0_i32 = arith.constant 0 : i32
    %c0_i32_0 = arith.constant 0 : i32
    return %arg0, %c0_i32 : i32, i32
  }
  func.func @transform_1(%arg0: i32) -> (i32, i32) {
    %c0_i32 = arith.constant 0 : i32
    %c0_i32_0 = arith.constant 0 : i32
    %c0_i32_1 = arith.constant 0 : i32
    return %c0_i32, %c0_i32_0 : i32, i32
  }
  func.func @transform_2(%arg0: i32) -> (i32, i32) {
    %c0_i32 = arith.constant 0 : i32
    %c0_i32_0 = arith.constant 0 : i32
    %c0_i32_1 = arith.constant 0 : i32
    return %c0_i32, %c0_i32_0 : i32, i32
  }
  func.func @transform_3(%arg0: i32) -> (i32, i32) {
    %c0_i32 = arith.constant 0 : i32
    %c0_i32_0 = arith.constant 0 : i32
    %c0_i32_1 = arith.constant 0 : i32
    return %c0_i32, %c0_i32_0 : i32, i32
  }
  func.func @transform_4(%arg0: i32) -> (i32, i32) {
    %c0_i32 = arith.constant 0 : i32
    %c0_i32_0 = arith.constant 0 : i32
    %c0_i32_1 = arith.constant 0 : i32
    return %c0_i32, %c0_i32_0 : i32, i32
  }
  func.func @transform_5(%arg0: i32) -> (i32, i32) {
    %c0_i32 = arith.constant 0 : i32
    %c0_i32_0 = arith.constant 0 : i32
    %c0_i32_1 = arith.constant 0 : i32
    return %c0_i32, %c0_i32_0 : i32, i32
  }
  func.func @transform_6(%arg0: i32) -> (i32, i32) {
    %c0_i32 = arith.constant 0 : i32
    %c0_i32_0 = arith.constant 0 : i32
    %c0_i32_1 = arith.constant 0 : i32
    return %c0_i32, %c0_i32_0 : i32, i32
  }
  func.func @transform_7(%arg0: i32) -> (i32, i32) {
    %c0_i32 = arith.constant 0 : i32
    %c0_i32_0 = arith.constant 0 : i32
    %c0_i32_1 = arith.constant 0 : i32
    return %c0_i32, %c0_i32_0 : i32, i32
  }
  func.func @transform_8(%arg0: i32) -> (i32, i32) {
    %c0_i32 = arith.constant 0 : i32
    %c0_i32_0 = arith.constant 0 : i32
    %c0_i32_1 = arith.constant 0 : i32
    return %c0_i32, %c0_i32_0 : i32, i32
  }
  func.func @transform_9(%arg0: i32) -> (i32, i32) {
    %c0_i32 = arith.constant 0 : i32
    %c0_i32_0 = arith.constant 0 : i32
    return %arg0, %c0_i32 : i32, i32
  }
}

</mosaic_0001>

<llo_original>
// kernel: subnetwork_up_stage.1
$region0: #{subnetwork_up_stage.1}
  #allocation0 [shape = 'u32[]', space=smem, size = 0x4, offset = 0x4, fixed_abs, tag = 'smem constant byte address 0x4 - core index']
  #allocation1 [shape = 'u32[144,128]{1,0:T(1,128)}', space=vmem, size = 0x12000, scoped, tag = 'internal scratch']
  %s0 = inlined_call_operand.vmem [shape: f32[32,128], index: 0, kind: input, shape index: {}]
  %s1 = inlined_call_operand.vmem [shape: f32[128,64], index: 1, kind: input, shape index: {}]
  %s2 = inlined_call_operand.vmem [shape: f32[1,64], index: 2, kind: input, shape index: {}]
  %s3 = inlined_call_operand.vmem [shape: f32[64,256], index: 3, kind: input, shape index: {}]
  %s4 = inlined_call_operand.vmem [shape: f32[1,256], index: 4, kind: input, shape index: {}]
  %s5 = inlined_call_operand.vmem [shape: f32[128,256], index: 5, kind: input, shape index: {}]
  %s6 = inlined_call_operand.vmem [shape: f32[1,256], index: 6, kind: input, shape index: {}]
  %s7 = inlined_call_operand.vmem [shape: f32[128,256], index: 7, kind: input, shape index: {}]
  %s8 = inlined_call_operand.vmem [shape: f32[128,128], index: 8, kind: input, shape index: {}]
  %s9 = inlined_call_operand.vmem [shape: f32[32,256], index: 9, kind: output, shape index: {}]
  %s10 = sld [smem:[#allocation0]]
  $region46: #{subnetwork_up_stage.1} parent=0
    _
  %s12 = ssub.s32 1, %s10
  %s13 = scalar_select 0, %s12, %s10
  // Predicated region
  $region2: #{subnetwork_up_stage.1} parent=0 // pred_check
    _
  $region3: #{subnetwork_up_stage.1} parent=0 // pred_check_branch
    %15 = sbr.rel (0) target = $region5
  $region4: #{subnetwork_up_stage.1} parent=0 // pred_region
    _
  $region5: #{subnetwork_up_stage.1} parent=0 // pred_fallthru
    _
  // Predicated region
  $region6: #{subnetwork_up_stage.1} parent=0 // pred_check
    _
  $region7: #{subnetwork_up_stage.1} parent=0 // pred_check_branch
    %17 = sbr.rel (0) target = $region9
  $region8: #{subnetwork_up_stage.1} parent=0 // pred_region
    _
  $region9: #{subnetwork_up_stage.1} parent=0 // pred_fallthru
    _
  // Predicated region
  $region10: #{subnetwork_up_stage.1} parent=0 // pred_check
    _
  $region11: #{subnetwork_up_stage.1} parent=0 // pred_check_branch
    %19 = sbr.rel (0) target = $region13
  $region12: #{subnetwork_up_stage.1} parent=0 // pred_region
    _
  $region13: #{subnetwork_up_stage.1} parent=0 // pred_fallthru
    _
  // Predicated region
  $region14: #{subnetwork_up_stage.1} parent=0 // pred_check
    _
  $region15: #{subnetwork_up_stage.1} parent=0 // pred_check_branch
    %21 = sbr.rel (0) target = $region17
  $region16: #{subnetwork_up_stage.1} parent=0 // pred_region
    _
  $region17: #{subnetwork_up_stage.1} parent=0 // pred_fallthru
    _
  // Predicated region
  $region18: #{subnetwork_up_stage.1} parent=0 // pred_check
    _
  $region19: #{subnetwork_up_stage.1} parent=0 // pred_check_branch
    %23 = sbr.rel (0) target = $region21
  $region20: #{subnetwork_up_stage.1} parent=0 // pred_region
    _
  $region21: #{subnetwork_up_stage.1} parent=0 // pred_fallthru
    _
  // Predicated region
  $region22: #{subnetwork_up_stage.1} parent=0 // pred_check
    _
  $region23: #{subnetwork_up_stage.1} parent=0 // pred_check_branch
    %25 = sbr.rel (0) target = $region25
  $region24: #{subnetwork_up_stage.1} parent=0 // pred_region
    _
  $region25: #{subnetwork_up_stage.1} parent=0 // pred_fallthru
    _
  // Predicated region
  $region26: #{subnetwork_up_stage.1} parent=0 // pred_check
    _
  $region27: #{subnetwork_up_stage.1} parent=0 // pred_check_branch
    %27 = sbr.rel (0) target = $region29
  $region28: #{subnetwork_up_stage.1} parent=0 // pred_region
    _
  $region29: #{subnetwork_up_stage.1} parent=0 // pred_fallthru
    _
  // Predicated region
  $region30: #{subnetwork_up_stage.1} parent=0 // pred_check
    _
  $region31: #{subnetwork_up_stage.1} parent=0 // pred_check_branch
    %29 = sbr.rel (0) target = $region33
  $region32: #{subnetwork_up_stage.1} parent=0 // pred_region
    _
  $region33: #{subnetwork_up_stage.1} parent=0 // pred_fallthru
    _
  // Predicated region
  $region34: #{subnetwork_up_stage.1} parent=0 // pred_check
    _
  $region35: #{subnetwork_up_stage.1} parent=0 // pred_check_branch
    %31 = sbr.rel (0) target = $region37
  $region36: #{subnetwork_up_stage.1} parent=0 // pred_region
    _
  $region37: #{subnetwork_up_stage.1} parent=0 // pred_fallthru
    _
  %v32 = vld [vmem:[%s0] sm:$0xff]
  %v33 = vld [vmem:[%s0 + $0x8] sm:$0xff]
  %v34 = vld [vmem:[%s0 + $0x10] sm:$0xff]
  %v35 = vld [vmem:[%s0 + $0x18] sm:$0xff]
  %v36 = vld [vmem:[%s1] sm:$0xff]
  %v37 = vld [vmem:[%s1 + $0x8] sm:$0xff]
  %v38 = vld [vmem:[%s1 + $0x10] sm:$0xff]
  %v39 = vld [vmem:[%s1 + $0x18] sm:$0xff]
  %v40 = vld [vmem:[%s1 + $0x20] sm:$0xff]
  %v41 = vld [vmem:[%s1 + $0x28] sm:$0xff]
  %v42 = vld [vmem:[%s1 + $0x30] sm:$0xff]
  %v43 = vld [vmem:[%s1 + $0x38] sm:$0xff]
  %v44 = vld [vmem:[%s1 + $0x40] sm:$0xff]
  %v45 = vld [vmem:[%s1 + $0x48] sm:$0xff]
  %v46 = vld [vmem:[%s1 + $0x50] sm:$0xff]
  %v47 = vld [vmem:[%s1 + $0x58] sm:$0xff]
  %v48 = vld [vmem:[%s1 + $0x60] sm:$0xff]
  %v49 = vld [vmem:[%s1 + $0x68] sm:$0xff]
  %v50 = vld [vmem:[%s1 + $0x70] sm:$0xff]
  %v51 = vld [vmem:[%s1 + $0x78] sm:$0xff]
  %v52 = vld [vmem:[%s2] sm:$0x1]
  %v54 = vlaneseq
  %v55 = vshrl.u32 %v54, 7
  %v56 = vsub.s32 0, %v55
  %v57 = vrot.slane %v52, %v56
  %59 = vmatprep.subr.mxu0 0.0
  %60 = vmatpush1.msra.mxu0 %v36
  %61 = vmatprep.subr.mxu0 0.0
  %62 = vmatpush1.msra.mxu0 %v37
  %63 = vmatprep.subr.mxu0 0.0
  %64 = vmatpush1.msra.mxu0 %v38
  %65 = vmatprep.subr.mxu0 0.0
  %66 = vmatpush1.msra.mxu0 %v39
  %67 = vmatprep.subr.mxu0 0.0
  %68 = vmatpush1.msra.mxu0 %v40
  %69 = vmatprep.subr.mxu0 0.0
  %70 = vmatpush1.msra.mxu0 %v41
  %71 = vmatprep.subr.mxu0 0.0
  %72 = vmatpush1.msra.mxu0 %v42
  %73 = vmatprep.subr.mxu0 0.0
  %74 = vmatpush1.msra.mxu0 %v43
  %75 = vmatprep.subr.mxu0 0.0
  %76 = vmatpush1.msra.mxu0 %v44
  %77 = vmatprep.subr.mxu0 0.0
  %78 = vmatpush1.msra.mxu0 %v45
  %79 = vmatprep.subr.mxu0 0.0
  %80 = vmatpush1.msra.mxu0 %v46
  %81 = vmatprep.subr.mxu0 0.0
  %82 = vmatpush1.msra.mxu0 %v47
  %83 = vmatprep.subr.mxu0 0.0
  %84 = vmatpush1.msra.mxu0 %v48
  %85 = vmatprep.subr.mxu0 0.0
  %86 = vmatpush1.msra.mxu0 %v49
  %87 = vmatprep.subr.mxu0 0.0
  %88 = vmatpush1.msra.mxu0 %v50
  %89 = vmatprep.subr.mxu0 0.0
  %90 = vmatpush1.msra.mxu0 %v51
  %91 = vmatprep.subr.mxu0 0.0
  %92 = vmatpush1.msra.mxu0 0.0
  %93 = vmatprep.subr.mxu0 0.0
  %94 = vmatpush1.msra.mxu0 0.0
  %95 = vmatprep.subr.mxu0 0.0
  %96 = vmatpush1.msra.mxu0 0.0
  %97 = vmatprep.subr.mxu0 0.0
  %98 = vmatpush1.msra.mxu0 0.0
  %99 = vmatprep.subr.mxu0 0.0
  %100 = vmatpush1.msra.mxu0 0.0
  %101 = vmatprep.subr.mxu0 0.0
  %102 = vmatpush1.msra.mxu0 0.0
  %103 = vmatprep.subr.mxu0 0.0
  %104 = vmatpush1.msra.mxu0 0.0
  %105 = vmatprep.subr.mxu0 0.0
  %106 = vmatpush1.msra.mxu0 0.0
  %107 = vmatprep.subr.mxu0 0.0
  %108 = vmatpush1.msra.mxu0 0.0
  %109 = vmatprep.subr.mxu0 0.0
  %110 = vmatpush1.msra.mxu0 0.0
  %111 = vmatprep.subr.mxu0 0.0
  %112 = vmatpush1.msra.mxu0 0.0
  %113 = vmatprep.subr.mxu0 0.0
  %114 = vmatpush1.msra.mxu0 0.0
  %115 = vmatprep.subr.mxu0 0.0
  %116 = vmatpush1.msra.mxu0 0.0
  %117 = vmatprep.subr.mxu0 0.0
  %118 = vmatpush1.msra.mxu0 0.0
  %119 = vmatprep.subr.mxu0 0.0
  %120 = vmatpush1.msra.mxu0 0.0
  %121 = vmatprep.subr.mxu0 0.0
  %122 = vmatpush1.msra.mxu0 0.0
  %123 = vmatprep.mubr.f32.mxu0 0.0
  %124 = vmatmul.mubr.f32.gmra.mrb[0].mxu0 %v32
  %v125 = vpop.f32.mrb[0].mxu0
  %v126 = vadd.f32 %v57, %v125
  %v127 = vpop.f32.mrb[0].mxu0
  %128 = vmatprep.mubr.f32.mxu0 0.0
  %129 = vmatmul.mubr.f32.gmra.mrb[0].mxu0 %v33
  %v130 = vpop.f32.mrb[0].mxu0
  %v131 = vadd.f32 %v57, %v130
  %v132 = vpop.f32.mrb[0].mxu0
  %133 = vmatprep.mubr.f32.mxu0 0.0
  %134 = vmatmul.mubr.f32.gmra.mrb[0].mxu0 %v34
  %v135 = vpop.f32.mrb[0].mxu0
  %v136 = vadd.f32 %v57, %v135
  %v137 = vpop.f32.mrb[0].mxu0
  %138 = vmatprep.mubr.f32.mxu0 0.0
  %139 = vmatmul.mubr.f32.gmra.mrb[0].mxu0 %v35
  %v140 = vpop.f32.mrb[0].mxu0
  %v141 = vadd.f32 %v57, %v140
  %v142 = vpop.f32.mrb[0].mxu0
  %143 = vdwg.mxu0
  %v144 = vmax.f32 %v126, 0.0
  %v145 = vmax.f32 %v131, 0.0
  %v146 = vmax.f32 %v136, 0.0
  %v147 = vmax.f32 %v141, 0.0
  %v148 = vld [vmem:[%s3] sm:$0xff]
  %v149 = vld [vmem:[%s3 + $0x8] sm:$0xff]
  %v150 = vld [vmem:[%s3 + $0x10] sm:$0xff]
  %v151 = vld [vmem:[%s3 + $0x18] sm:$0xff]
  %v152 = vld [vmem:[%s3 + $0x20] sm:$0xff]
  %v153 = vld [vmem:[%s3 + $0x28] sm:$0xff]
  %v154 = vld [vmem:[%s3 + $0x30] sm:$0xff]
  %v155 = vld [vmem:[%s3 + $0x38] sm:$0xff]
  %v156 = vld [vmem:[%s3 + $0x40] sm:$0xff]
  %v157 = vld [vmem:[%s3 + $0x48] sm:$0xff]
  %v158 = vld [vmem:[%s3 + $0x50] sm:$0xff]
  %v159 = vld [vmem:[%s3 + $0x58] sm:$0xff]
  %v160 = vld [vmem:[%s3 + $0x60] sm:$0xff]
  %v161 = vld [vmem:[%s3 + $0x68] sm:$0xff]
  %v162 = vld [vmem:[%s3 + $0x70] sm:$0xff]
  %v163 = vld [vmem:[%s3 + $0x78] sm:$0xff]
  %v164 = vld [vmem:[%s4] sm:$0x3]
  %v166 = vlaneseq
  %v167 = vshrl.u32 %v166, 7
  %v168 = vsub.s32 0, %v167
  %v169 = vrot.slane %v164, %v168
  %v170 = vlaneseq
  %v171 = vshrl.u32 %v170, 7
  %v172 = vsub.s32 1, %v171
  %v173 = vrot.slane %v164, %v172
  %vm176 = vcmask 523264
  %v178 = vsel %vm176, %v144, 0
  %v181 = vsel %vm176, %v145, 0
  %v184 = vsel %vm176, %v146, 0
  %v187 = vsel %vm176, %v147, 0
  %189 = vmatprep.subr.mxu0 %v149
  %190 = vmatpush1.msra.mxu0 %v148
  %191 = vmatprep.subr.mxu0 %v151
  %192 = vmatpush1.msra.mxu0 %v150
  %193 = vmatprep.subr.mxu0 %v153
  %194 = vmatpush1.msra.mxu0 %v152
  %195 = vmatprep.subr.mxu0 %v155
  %196 = vmatpush1.msra.mxu0 %v154
  %197 = vmatprep.subr.mxu0 %v157
  %198 = vmatpush1.msra.mxu0 %v156
  %199 = vmatprep.subr.mxu0 %v159
  %200 = vmatpush1.msra.mxu0 %v158
  %201 = vmatprep.subr.mxu0 %v161
  %202 = vmatpush1.msra.mxu0 %v160
  %203 = vmatprep.subr.mxu0 %v163
  %204 = vmatpush1.msra.mxu0 %v162
  %205 = vmatprep.subr.mxu0 0.0
  %206 = vmatpush1.msra.mxu0 0.0
  %207 = vmatprep.subr.mxu0 0.0
  %208 = vmatpush1.msra.mxu0 0.0
  %209 = vmatprep.subr.mxu0 0.0
  %210 = vmatpush1.msra.mxu0 0.0
  %211 = vmatprep.subr.mxu0 0.0
  %212 = vmatpush1.msra.mxu0 0.0
  %213 = vmatprep.subr.mxu0 0.0
  %214 = vmatpush1.msra.mxu0 0.0
  %215 = vmatprep.subr.mxu0 0.0
  %216 = vmatpush1.msra.mxu0 0.0
  %217 = vmatprep.subr.mxu0 0.0
  %218 = vmatpush1.msra.mxu0 0.0
  %219 = vmatprep.subr.mxu0 0.0
  %220 = vmatpush1.msra.mxu0 0.0
  %221 = vmatprep.subr.mxu0 0.0
  %222 = vmatpush1.msra.mxu0 0.0
  %223 = vmatprep.subr.mxu0 0.0
  %224 = vmatpush1.msra.mxu0 0.0
  %225 = vmatprep.subr.mxu0 0.0
  %226 = vmatpush1.msra.mxu0 0.0
  %227 = vmatprep.subr.mxu0 0.0
  %228 = vmatpush1.msra.mxu0 0.0
  %229 = vmatprep.subr.mxu0 0.0
  %230 = vmatpush1.msra.mxu0 0.0
  %231 = vmatprep.subr.mxu0 0.0
  %232 = vmatpush1.msra.mxu0 0.0
  %233 = vmatprep.subr.mxu0 0.0
  %234 = vmatpush1.msra.mxu0 0.0
  %235 = vmatprep.subr.mxu0 0.0
  %236 = vmatpush1.msra.mxu0 0.0
  %237 = vmatprep.subr.mxu0 0.0
  %238 = vmatpush1.msra.mxu0 0.0
  %239 = vmatprep.subr.mxu0 0.0
  %240 = vmatpush1.msra.mxu0 0.0
  %241 = vmatprep.subr.mxu0 0.0
  %242 = vmatpush1.msra.mxu0 0.0
  %243 = vmatprep.subr.mxu0 0.0
  %244 = vmatpush1.msra.mxu0 0.0
  %245 = vmatprep.subr.mxu0 0.0
  %246 = vmatpush1.msra.mxu0 0.0
  %247 = vmatprep.subr.mxu0 0.0
  %248 = vmatpush1.msra.mxu0 0.0
  %249 = vmatprep.subr.mxu0 0.0
  %250 = vmatpush1.msra.mxu0 0.0
  %251 = vmatprep.subr.mxu0 0.0
  %252 = vmatpush1.msra.mxu0 0.0
  %253 = vmatprep.mubr.f32.mxu0 0.0
  %254 = vmatmul.mubr.f32.gmra.mrb[0].mxu0 %v178
  %v255 = vpop.f32.mrb[0].mxu0
  %v256 = vadd.f32 %v169, %v255
  %v257 = vpop.f32.mrb[0].mxu0
  %v258 = vadd.f32 %v173, %v257
  %259 = vmatprep.mubr.f32.mxu0 0.0
  %260 = vmatmul.mubr.f32.gmra.mrb[0].mxu0 %v181
  %v261 = vpop.f32.mrb[0].mxu0
  %v262 = vadd.f32 %v169, %v261
  %v263 = vpop.f32.mrb[0].mxu0
  %v264 = vadd.f32 %v173, %v263
  %265 = vmatprep.mubr.f32.mxu0 0.0
  %266 = vmatmul.mubr.f32.gmra.mrb[0].mxu0 %v184
  %v267 = vpop.f32.mrb[0].mxu0
  %v268 = vadd.f32 %v169, %v267
  %v269 = vpop.f32.mrb[0].mxu0
  %v270 = vadd.f32 %v173, %v269
  %271 = vmatprep.mubr.f32.mxu0 0.0
  %272 = vmatmul.mubr.f32.gmra.mrb[0].mxu0 %v187
  %v273 = vpop.f32.mrb[0].mxu0
  %v274 = vadd.f32 %v169, %v273
  %v275 = vpop.f32.mrb[0].mxu0
  %v276 = vadd.f32 %v173, %v275
  %277 = vdwg.mxu0
  %v278 = vld [vmem:[%s5] sm:$0xff]
  %v279 = vld [vmem:[%s5 + $0x8] sm:$0xff]
  %v280 = vld [vmem:[%s5 + $0x10] sm:$0xff]
  %v281 = vld [vmem:[%s5 + $0x18] sm:$0xff]
  %v282 = vld [vmem:[%s5 + $0x20] sm:$0xff]
  %v283 = vld [vmem:[%s5 + $0x28] sm:$0xff]
  %v284 = vld [vmem:[%s5 + $0x30] sm:$0xff]
  %v285 = vld [vmem:[%s5 + $0x38] sm:$0xff]
  %v286 = vld [vmem:[%s5 + $0x40] sm:$0xff]
  %v287 = vld [vmem:[%s5 + $0x48] sm:$0xff]
  %v288 = vld [vmem:[%s5 + $0x50] sm:$0xff]
  %v289 = vld [vmem:[%s5 + $0x58] sm:$0xff]
  %v290 = vld [vmem:[%s5 + $0x60] sm:$0xff]
  %v291 = vld [vmem:[%s5 + $0x68] sm:$0xff]
  %v292 = vld [vmem:[%s5 + $0x70] sm:$0xff]
  %v293 = vld [vmem:[%s5 + $0x78] sm:$0xff]
  %v294 = vld [vmem:[%s5 + $0x80] sm:$0xff]
  %v295 = vld [vmem:[%s5 + $0x88] sm:$0xff]
  %v296 = vld [vmem:[%s5 + $0x90] sm:$0xff]
  %v297 = vld [vmem:[%s5 + $0x98] sm:$0xff]
  %v298 = vld [vmem:[%s5 + $0xa0] sm:$0xff]
  %v299 = vld [vmem:[%s5 + $0xa8] sm:$0xff]
  %v300 = vld [vmem:[%s5 + $0xb0] sm:$0xff]
  %v301 = vld [vmem:[%s5 + $0xb8] sm:$0xff]
  %v302 = vld [vmem:[%s5 + $0xc0] sm:$0xff]
  %v303 = vld [vmem:[%s5 + $0xc8] sm:$0xff]
  %v304 = vld [vmem:[%s5 + $0xd0] sm:$0xff]
  %v305 = vld [vmem:[%s5 + $0xd8] sm:$0xff]
  %v306 = vld [vmem:[%s5 + $0xe0] sm:$0xff]
  %v307 = vld [vmem:[%s5 + $0xe8] sm:$0xff]
  %v308 = vld [vmem:[%s5 + $0xf0] sm:$0xff]
  %v309 = vld [vmem:[%s5 + $0xf8] sm:$0xff]
  %v310 = vld [vmem:[%s6] sm:$0x3]
  %v312 = vlaneseq
  %v313 = vshrl.u32 %v312, 7
  %v314 = vsub.s32 0, %v313
  %v315 = vrot.slane %v310, %v314
  %v316 = vlaneseq
  %v317 = vshrl.u32 %v316, 7
  %v318 = vsub.s32 1, %v317
  %v319 = vrot.slane %v310, %v318
  %322 = vmatprep.subr.mxu0 %v279
  %323 = vmatpush1.msra.mxu0 %v278
  %324 = vmatprep.subr.mxu0 %v281
  %325 = vmatpush1.msra.mxu0 %v280
  %326 = vmatprep.subr.mxu0 %v283
  %327 = vmatpush1.msra.mxu0 %v282
  %328 = vmatprep.subr.mxu0 %v285
  %329 = vmatpush1.msra.mxu0 %v284
  %330 = vmatprep.subr.mxu0 %v287
  %331 = vmatpush1.msra.mxu0 %v286
  %332 = vmatprep.subr.mxu0 %v289
  %333 = vmatpush1.msra.mxu0 %v288
  %334 = vmatprep.subr.mxu0 %v291
  %335 = vmatpush1.msra.mxu0 %v290
  %336 = vmatprep.subr.mxu0 %v293
  %337 = vmatpush1.msra.mxu0 %v292
  %338 = vmatprep.subr.mxu0 %v295
  %339 = vmatpush1.msra.mxu0 %v294
  %340 = vmatprep.subr.mxu0 %v297
  %341 = vmatpush1.msra.mxu0 %v296
  %342 = vmatprep.subr.mxu0 %v299
  %343 = vmatpush1.msra.mxu0 %v298
  %344 = vmatprep.subr.mxu0 %v301
  %345 = vmatpush1.msra.mxu0 %v300
  %346 = vmatprep.subr.mxu0 %v303
  %347 = vmatpush1.msra.mxu0 %v302
  %348 = vmatprep.subr.mxu0 %v305
  %349 = vmatpush1.msra.mxu0 %v304
  %350 = vmatprep.subr.mxu0 %v307
  %351 = vmatpush1.msra.mxu0 %v306
  %352 = vmatprep.subr.mxu0 %v309
  %353 = vmatpush1.msra.mxu0 %v308
  %354 = vmatprep.subr.mxu0 0.0
  %355 = vmatpush1.msra.mxu0 0.0
  %356 = vmatprep.subr.mxu0 0.0
  %357 = vmatpush1.msra.mxu0 0.0
  %358 = vmatprep.subr.mxu0 0.0
  %359 = vmatpush1.msra.mxu0 0.0
  %360 = vmatprep.subr.mxu0 0.0
  %361 = vmatpush1.msra.mxu0 0.0
  %362 = vmatprep.subr.mxu0 0.0
  %363 = vmatpush1.msra.mxu0 0.0
  %364 = vmatprep.subr.mxu0 0.0
  %365 = vmatpush1.msra.mxu0 0.0
  %366 = vmatprep.subr.mxu0 0.0
  %367 = vmatpush1.msra.mxu0 0.0
  %368 = vmatprep.subr.mxu0 0.0
  %369 = vmatpush1.msra.mxu0 0.0
  %370 = vmatprep.subr.mxu0 0.0
  %371 = vmatpush1.msra.mxu0 0.0
  %372 = vmatprep.subr.mxu0 0.0
  %373 = vmatpush1.msra.mxu0 0.0
  %374 = vmatprep.subr.mxu0 0.0
  %375 = vmatpush1.msra.mxu0 0.0
  %376 = vmatprep.subr.mxu0 0.0
  %377 = vmatpush1.msra.mxu0 0.0
  %378 = vmatprep.subr.mxu0 0.0
  %379 = vmatpush1.msra.mxu0 0.0
  %380 = vmatprep.subr.mxu0 0.0
  %381 = vmatpush1.msra.mxu0 0.0
  %382 = vmatprep.subr.mxu0 0.0
  %383 = vmatpush1.msra.mxu0 0.0
  %384 = vmatprep.subr.mxu0 0.0
  %385 = vmatpush1.msra.mxu0 0.0
  %386 = vmatprep.mubr.f32.mxu0 0.0
  %387 = vmatmul.mubr.f32.gmra.mrb[0].mxu0 %v32
  %v388 = vpop.f32.mrb[0].mxu0
  %v389 = vadd.f32 %v315, %v388
  %v390 = vpop.f32.mrb[0].mxu0
  %v391 = vadd.f32 %v319, %v390
  %392 = vmatprep.mubr.f32.mxu0 0.0
  %393 = vmatmul.mubr.f32.gmra.mrb[0].mxu0 %v33
  %v394 = vpop.f32.mrb[0].mxu0
  %v395 = vadd.f32 %v315, %v394
  %v396 = vpop.f32.mrb[0].mxu0
  %v397 = vadd.f32 %v319, %v396
  %398 = vmatprep.mubr.f32.mxu0 0.0
  %399 = vmatmul.mubr.f32.gmra.mrb[0].mxu0 %v34
  %v400 = vpop.f32.mrb[0].mxu0
  %v401 = vadd.f32 %v315, %v400
  %v402 = vpop.f32.mrb[0].mxu0
  %v403 = vadd.f32 %v319, %v402
  %404 = vmatprep.mubr.f32.mxu0 0.0
  %405 = vmatmul.mubr.f32.gmra.mrb[0].mxu0 %v35
  %v406 = vpop.f32.mrb[0].mxu0
  %v407 = vadd.f32 %v315, %v406
  %v408 = vpop.f32.mrb[0].mxu0
  %v409 = vadd.f32 %v319, %v408
  %410 = vdwg.mxu0
  %v411 = vld [vmem:[%s7] sm:$0xff]
  %v412 = vld [vmem:[%s7 + $0x8] sm:$0xff]
  %v413 = vld [vmem:[%s7 + $0x10] sm:$0xff]
  %v414 = vld [vmem:[%s7 + $0x18] sm:$0xff]
  %v415 = vld [vmem:[%s7 + $0x20] sm:$0xff]
  %v416 = vld [vmem:[%s7 + $0x28] sm:$0xff]
  %v417 = vld [vmem:[%s7 + $0x30] sm:$0xff]
  %v418 = vld [vmem:[%s7 + $0x38] sm:$0xff]
  %v419 = vld [vmem:[%s7 + $0x40] sm:$0xff]
  %v420 = vld [vmem:[%s7 + $0x48] sm:$0xff]
  %v421 = vld [vmem:[%s7 + $0x50] sm:$0xff]
  %v422 = vld [vmem:[%s7 + $0x58] sm:$0xff]
  %v423 = vld [vmem:[%s7 + $0x60] sm:$0xff]
  %v424 = vld [vmem:[%s7 + $0x68] sm:$0xff]
  %v425 = vld [vmem:[%s7 + $0x70] sm:$0xff]
  %v426 = vld [vmem:[%s7 + $0x78] sm:$0xff]
  %v427 = vld [vmem:[%s7 + $0x80] sm:$0xff]
  %v428 = vld [vmem:[%s7 + $0x88] sm:$0xff]
  %v429 = vld [vmem:[%s7 + $0x90] sm:$0xff]
  %v430 = vld [vmem:[%s7 + $0x98] sm:$0xff]
  %v431 = vld [vmem:[%s7 + $0xa0] sm:$0xff]
  %v432 = vld [vmem:[%s7 + $0xa8] sm:$0xff]
  %v433 = vld [vmem:[%s7 + $0xb0] sm:$0xff]
  %v434 = vld [vmem:[%s7 + $0xb8] sm:$0xff]
  %v435 = vld [vmem:[%s7 + $0xc0] sm:$0xff]
  %v436 = vld [vmem:[%s7 + $0xc8] sm:$0xff]
  %v437 = vld [vmem:[%s7 + $0xd0] sm:$0xff]
  %v438 = vld [vmem:[%s7 + $0xd8] sm:$0xff]
  %v439 = vld [vmem:[%s7 + $0xe0] sm:$0xff]
  %v440 = vld [vmem:[%s7 + $0xe8] sm:$0xff]
  %v441 = vld [vmem:[%s7 + $0xf0] sm:$0xff]
  %v442 = vld [vmem:[%s7 + $0xf8] sm:$0xff]
  %v443 = vld [vmem:[%s8] sm:$0xff]
  %v444 = vld [vmem:[%s8 + $0x8] sm:$0xff]
  %v445 = vld [vmem:[%s8 + $0x10] sm:$0xff]
  %v446 = vld [vmem:[%s8 + $0x18] sm:$0xff]
  %v447 = vld [vmem:[%s8 + $0x20] sm:$0xff]
  %v448 = vld [vmem:[%s8 + $0x28] sm:$0xff]
  %v449 = vld [vmem:[%s8 + $0x30] sm:$0xff]
  %v450 = vld [vmem:[%s8 + $0x38] sm:$0xff]
  %v451 = vld [vmem:[%s8 + $0x40] sm:$0xff]
  %v452 = vld [vmem:[%s8 + $0x48] sm:$0xff]
  %v453 = vld [vmem:[%s8 + $0x50] sm:$0xff]
  %v454 = vld [vmem:[%s8 + $0x58] sm:$0xff]
  %v455 = vld [vmem:[%s8 + $0x60] sm:$0xff]
  %v456 = vld [vmem:[%s8 + $0x68] sm:$0xff]
  %v457 = vld [vmem:[%s8 + $0x70] sm:$0xff]
  %v458 = vld [vmem:[%s8 + $0x78] sm:$0xff]
  %459 = vmatprep.subr.mxu0 %v412
  %460 = vmatpush1.msra.mxu0 %v411
  %461 = vmatprep.subr.mxu0 %v414
  %462 = vmatpush1.msra.mxu0 %v413
  %463 = vmatprep.subr.mxu0 %v416
  %464 = vmatpush1.msra.mxu0 %v415
  %465 = vmatprep.subr.mxu0 %v418
  %466 = vmatpush1.msra.mxu0 %v417
  %467 = vmatprep.subr.mxu0 %v420
  %468 = vmatpush1.msra.mxu0 %v419
  %469 = vmatprep.subr.mxu0 %v422
  %470 = vmatpush1.msra.mxu0 %v421
  %471 = vmatprep.subr.mxu0 %v424
  %472 = vmatpush1.msra.mxu0 %v423
  %473 = vmatprep.subr.mxu0 %v426
  %474 = vmatpush1.msra.mxu0 %v425
  %475 = vmatprep.subr.mxu0 %v428
  %476 = vmatpush1.msra.mxu0 %v427
  %477 = vmatprep.subr.mxu0 %v430
  %478 = vmatpush1.msra.mxu0 %v429
  %479 = vmatprep.subr.mxu0 %v432
  %480 = vmatpush1.msra.mxu0 %v431
  %481 = vmatprep.subr.mxu0 %v434
  %482 = vmatpush1.msra.mxu0 %v433
  %483 = vmatprep.subr.mxu0 %v436
  %484 = vmatpush1.msra.mxu0 %v435
  %485 = vmatprep.subr.mxu0 %v438
  %486 = vmatpush1.msra.mxu0 %v437
  %487 = vmatprep.subr.mxu0 %v440
  %488 = vmatpush1.msra.mxu0 %v439
  %489 = vmatprep.subr.mxu0 %v442
  %490 = vmatpush1.msra.mxu0 %v441
  %491 = vmatprep.subr.mxu0 0.0
  %492 = vmatpush1.msra.mxu0 0.0
  %493 = vmatprep.subr.mxu0 0.0
  %494 = vmatpush1.msra.mxu0 0.0
  %495 = vmatprep.subr.mxu0 0.0
  %496 = vmatpush1.msra.mxu0 0.0
  %497 = vmatprep.subr.mxu0 0.0
  %498 = vmatpush1.msra.mxu0 0.0
  %499 = vmatprep.subr.mxu0 0.0
  %500 = vmatpush1.msra.mxu0 0.0
  %501 = vmatprep.subr.mxu0 0.0
  %502 = vmatpush1.msra.mxu0 0.0
  %503 = vmatprep.subr.mxu0 0.0
  %504 = vmatpush1.msra.mxu0 0.0
  %505 = vmatprep.subr.mxu0 0.0
  %506 = vmatpush1.msra.mxu0 0.0
  %507 = vmatprep.subr.mxu0 0.0
  %508 = vmatpush1.msra.mxu0 0.0
  %509 = vmatprep.subr.mxu0 0.0
  %510 = vmatpush1.msra.mxu0 0.0
  %511 = vmatprep.subr.mxu0 0.0
  %512 = vmatpush1.msra.mxu0 0.0
  %513 = vmatprep.subr.mxu0 0.0
  %514 = vmatpush1.msra.mxu0 0.0
  %515 = vmatprep.subr.mxu0 0.0
  %516 = vmatpush1.msra.mxu0 0.0
  %517 = vmatprep.subr.mxu0 0.0
  %518 = vmatpush1.msra.mxu0 0.0
  %519 = vmatprep.subr.mxu0 0.0
  %520 = vmatpush1.msra.mxu0 0.0
  %521 = vmatprep.subr.mxu0 0.0
  %522 = vmatpush1.msra.mxu0 0.0
  %523 = vmatprep.mubr.f32.mxu0 0.0
  %524 = vmatmul.mubr.f32.gmra.mrb[0].mxu0 %v256
  %v525 = vpop.f32.mrb[0].mxu0
  %v526 = vadd.f32 0.0, %v525
  %v527 = vpop.f32.mrb[0].mxu0
  %v528 = vadd.f32 0.0, %v527
  %529 = vmatprep.mubr.f32.mxu0 0.0
  %530 = vmatmul.mubr.f32.gmra.mrb[0].mxu0 %v262
  %v531 = vpop.f32.mrb[0].mxu0
  %v532 = vadd.f32 0.0, %v531
  %v533 = vpop.f32.mrb[0].mxu0
  %v534 = vadd.f32 0.0, %v533
  %535 = vmatprep.mubr.f32.mxu0 0.0
  %536 = vmatmul.mubr.f32.gmra.mrb[0].mxu0 %v268
  %v537 = vpop.f32.mrb[0].mxu0
  %v538 = vadd.f32 0.0, %v537
  %v539 = vpop.f32.mrb[0].mxu0
  %v540 = vadd.f32 0.0, %v539
  %541 = vmatprep.mubr.f32.mxu0 0.0
  %542 = vmatmul.mubr.f32.gmra.mrb[0].mxu0 %v274
  %v543 = vpop.f32.mrb[0].mxu0
  %v544 = vadd.f32 0.0, %v543
  %v545 = vpop.f32.mrb[0].mxu0
  %v546 = vadd.f32 0.0, %v545
  %547 = vdwg.mxu0
  %v548 = vadd.f32 %v526, %v389
  %v549 = vadd.f32 %v532, %v395
  %v550 = vadd.f32 %v538, %v401
  %v551 = vadd.f32 %v544, %v407
  %v552 = vadd.f32 %v528, %v391
  %v553 = vadd.f32 %v534, %v397
  %v554 = vadd.f32 %v540, %v403
  %v555 = vadd.f32 %v546, %v409
  %v556 = vmax.f32 %v552, 0.0
  %v557 = vmax.f32 %v553, 0.0
  %v558 = vmax.f32 %v554, 0.0
  %v559 = vmax.f32 %v555, 0.0
  %560 = vmatprep.subr.mxu0 0.0
  %561 = vmatpush1.msra.mxu0 %v443
  %562 = vmatprep.subr.mxu0 0.0
  %563 = vmatpush1.msra.mxu0 %v444
  %564 = vmatprep.subr.mxu0 0.0
  %565 = vmatpush1.msra.mxu0 %v445
  %566 = vmatprep.subr.mxu0 0.0
  %567 = vmatpush1.msra.mxu0 %v446
  %568 = vmatprep.subr.mxu0 0.0
  %569 = vmatpush1.msra.mxu0 %v447
  %570 = vmatprep.subr.mxu0 0.0
  %571 = vmatpush1.msra.mxu0 %v448
  %572 = vmatprep.subr.mxu0 0.0
  %573 = vmatpush1.msra.mxu0 %v449
  %574 = vmatprep.subr.mxu0 0.0
  %575 = vmatpush1.msra.mxu0 %v450
  %576 = vmatprep.subr.mxu0 0.0
  %577 = vmatpush1.msra.mxu0 %v451
  %578 = vmatprep.subr.mxu0 0.0
  %579 = vmatpush1.msra.mxu0 %v452
  %580 = vmatprep.subr.mxu0 0.0
  %581 = vmatpush1.msra.mxu0 %v453
  %582 = vmatprep.subr.mxu0 0.0
  %583 = vmatpush1.msra.mxu0 %v454
  %584 = vmatprep.subr.mxu0 0.0
  %585 = vmatpush1.msra.mxu0 %v455
  %586 = vmatprep.subr.mxu0 0.0
  %587 = vmatpush1.msra.mxu0 %v456
  %588 = vmatprep.subr.mxu0 0.0
  %589 = vmatpush1.msra.mxu0 %v457
  %590 = vmatprep.subr.mxu0 0.0
  %591 = vmatpush1.msra.mxu0 %v458
  %592 = vmatprep.subr.mxu0 0.0
  %593 = vmatpush1.msra.mxu0 0.0
  %594 = vmatprep.subr.mxu0 0.0
  %595 = vmatpush1.msra.mxu0 0.0
  %596 = vmatprep.subr.mxu0 0.0
  %597 = vmatpush1.msra.mxu0 0.0
  %598 = vmatprep.subr.mxu0 0.0
  %599 = vmatpush1.msra.mxu0 0.0
  %600 = vmatprep.subr.mxu0 0.0
  %601 = vmatpush1.msra.mxu0 0.0
  %602 = vmatprep.subr.mxu0 0.0
  %603 = vmatpush1.msra.mxu0 0.0
  %604 = vmatprep.subr.mxu0 0.0
  %605 = vmatpush1.msra.mxu0 0.0
  %606 = vmatprep.subr.mxu0 0.0
  %607 = vmatpush1.msra.mxu0 0.0
  %608 = vmatprep.subr.mxu0 0.0
  %609 = vmatpush1.msra.mxu0 0.0
  %610 = vmatprep.subr.mxu0 0.0
  %611 = vmatpush1.msra.mxu0 0.0
  %612 = vmatprep.subr.mxu0 0.0
  %613 = vmatpush1.msra.mxu0 0.0
  %614 = vmatprep.subr.mxu0 0.0
  %615 = vmatpush1.msra.mxu0 0.0
  %616 = vmatprep.subr.mxu0 0.0
  %617 = vmatpush1.msra.mxu0 0.0
  %618 = vmatprep.subr.mxu0 0.0
  %619 = vmatpush1.msra.mxu0 0.0
  %620 = vmatprep.subr.mxu0 0.0
  %621 = vmatpush1.msra.mxu0 0.0
  %622 = vmatprep.subr.mxu0 0.0
  %623 = vmatpush1.msra.mxu0 0.0
  %624 = vmatprep.mubr.f32.mxu0 0.0
  %625 = vmatmul.mubr.f32.gmra.mrb[0].mxu0 %v556
  %v626 = vpop.f32.mrb[0].mxu0
  %v627 = vadd.f32 %v548, %v626
  %v628 = vpop.f32.mrb[0].mxu0
  %629 = vmatprep.mubr.f32.mxu0 0.0
  %630 = vmatmul.mubr.f32.gmra.mrb[0].mxu0 %v557
  %v631 = vpop.f32.mrb[0].mxu0
  %v632 = vadd.f32 %v549, %v631
  %v633 = vpop.f32.mrb[0].mxu0
  %634 = vmatprep.mubr.f32.mxu0 0.0
  %635 = vmatmul.mubr.f32.gmra.mrb[0].mxu0 %v558
  %v636 = vpop.f32.mrb[0].mxu0
  %v637 = vadd.f32 %v550, %v636
  %v638 = vpop.f32.mrb[0].mxu0
  %639 = vmatprep.mubr.f32.mxu0 0.0
  %640 = vmatmul.mubr.f32.gmra.mrb[0].mxu0 %v559
  %v641 = vpop.f32.mrb[0].mxu0
  %v642 = vadd.f32 %v551, %v641
  %v643 = vpop.f32.mrb[0].mxu0
  %644 = vdwg.mxu0
  %v645 = vmax.f32 %v627, 0.0
  %v646 = vmax.f32 %v632, 0.0
  %v647 = vmax.f32 %v637, 0.0
  %v648 = vmax.f32 %v642, 0.0
  %649 = vst [vmem:[%s9] sm:$0xff] %v645
  %650 = vst [vmem:[%s9 + $0x10] sm:$0xff] %v646
  %651 = vst [vmem:[%s9 + $0x20] sm:$0xff] %v647
  %652 = vst [vmem:[%s9 + $0x30] sm:$0xff] %v648
  %653 = vmatprep.subr.mxu0 %v412
  %654 = vmatpush1.msra.mxu0 %v411
  %655 = vmatprep.subr.mxu0 %v414
  %656 = vmatpush1.msra.mxu0 %v413
  %657 = vmatprep.subr.mxu0 %v416
  %658 = vmatpush1.msra.mxu0 %v415
  %659 = vmatprep.subr.mxu0 %v418
  %660 = vmatpush1.msra.mxu0 %v417
  %661 = vmatprep.subr.mxu0 %v420
  %662 = vmatpush1.msra.mxu0 %v419
  %663 = vmatprep.subr.mxu0 %v422
  %664 = vmatpush1.msra.mxu0 %v421
  %665 = vmatprep.subr.mxu0 %v424
  %666 = vmatpush1.msra.mxu0 %v423
  %667 = vmatprep.subr.mxu0 %v426
  %668 = vmatpush1.msra.mxu0 %v425
  %669 = vmatprep.subr.mxu0 %v428
  %670 = vmatpush1.msra.mxu0 %v427
  %671 = vmatprep.subr.mxu0 %v430
  %672 = vmatpush1.msra.mxu0 %v429
  %673 = vmatprep.subr.mxu0 %v432
  %674 = vmatpush1.msra.mxu0 %v431
  %675 = vmatprep.subr.mxu0 %v434
  %676 = vmatpush1.msra.mxu0 %v433
  %677 = vmatprep.subr.mxu0 %v436
  %678 = vmatpush1.msra.mxu0 %v435
  %679 = vmatprep.subr.mxu0 %v438
  %680 = vmatpush1.msra.mxu0 %v437
  %681 = vmatprep.subr.mxu0 %v440
  %682 = vmatpush1.msra.mxu0 %v439
  %683 = vmatprep.subr.mxu0 %v442
  %684 = vmatpush1.msra.mxu0 %v441
  %685 = vmatprep.subr.mxu0 0.0
  %686 = vmatpush1.msra.mxu0 0.0
  %687 = vmatprep.subr.mxu0 0.0
  %688 = vmatpush1.msra.mxu0 0.0
  %689 = vmatprep.subr.mxu0 0.0
  %690 = vmatpush1.msra.mxu0 0.0
  %691 = vmatprep.subr.mxu0 0.0
  %692 = vmatpush1.msra.mxu0 0.0
  %693 = vmatprep.subr.mxu0 0.0
  %694 = vmatpush1.msra.mxu0 0.0
  %695 = vmatprep.subr.mxu0 0.0
  %696 = vmatpush1.msra.mxu0 0.0
  %697 = vmatprep.subr.mxu0 0.0
  %698 = vmatpush1.msra.mxu0 0.0
  %699 = vmatprep.subr.mxu0 0.0
  %700 = vmatpush1.msra.mxu0 0.0
  %701 = vmatprep.subr.mxu0 0.0
  %702 = vmatpush1.msra.mxu0 0.0
  %703 = vmatprep.subr.mxu0 0.0
  %704 = vmatpush1.msra.mxu0 0.0
  %705 = vmatprep.subr.mxu0 0.0
  %706 = vmatpush1.msra.mxu0 0.0
  %707 = vmatprep.subr.mxu0 0.0
  %708 = vmatpush1.msra.mxu0 0.0
  %709 = vmatprep.subr.mxu0 0.0
  %710 = vmatpush1.msra.mxu0 0.0
  %711 = vmatprep.subr.mxu0 0.0
  %712 = vmatpush1.msra.mxu0 0.0
  %713 = vmatprep.subr.mxu0 0.0
  %714 = vmatpush1.msra.mxu0 0.0
  %715 = vmatprep.subr.mxu0 0.0
  %716 = vmatpush1.msra.mxu0 0.0
  %717 = vmatprep.mubr.f32.mxu0 0.0
  %718 = vmatmul.mubr.f32.gmra.mrb[0].mxu0 %v258
  %v719 = vpop.f32.mrb[0].mxu0
  %v720 = vadd.f32 0.0, %v719
  %v721 = vpop.f32.mrb[0].mxu0
  %v722 = vadd.f32 0.0, %v721
  %723 = vmatprep.mubr.f32.mxu0 0.0
  %724 = vmatmul.mubr.f32.gmra.mrb[0].mxu0 %v264
  %v725 = vpop.f32.mrb[0].mxu0
  %v726 = vadd.f32 0.0, %v725
  %v727 = vpop.f32.mrb[0].mxu0
  %v728 = vadd.f32 0.0, %v727
  %729 = vmatprep.mubr.f32.mxu0 0.0
  %730 = vmatmul.mubr.f32.gmra.mrb[0].mxu0 %v270
  %v731 = vpop.f32.mrb[0].mxu0
  %v732 = vadd.f32 0.0, %v731
  %v733 = vpop.f32.mrb[0].mxu0
  %v734 = vadd.f32 0.0, %v733
  %735 = vmatprep.mubr.f32.mxu0 0.0
  %736 = vmatmul.mubr.f32.gmra.mrb[0].mxu0 %v276
  %v737 = vpop.f32.mrb[0].mxu0
  %v738 = vadd.f32 0.0, %v737
  %v739 = vpop.f32.mrb[0].mxu0
  %v740 = vadd.f32 0.0, %v739
  %741 = vdwg.mxu0
  %v742 = vadd.f32 %v720, %v389
  %v743 = vadd.f32 %v726, %v395
  %v744 = vadd.f32 %v732, %v401
  %v745 = vadd.f32 %v738, %v407
  %v746 = vadd.f32 %v722, %v391
  %v747 = vadd.f32 %v728, %v397
  %v748 = vadd.f32 %v734, %v403
  %v749 = vadd.f32 %v740, %v409
  %v750 = vmax.f32 %v746, 0.0
  %v751 = vmax.f32 %v747, 0.0
  %v752 = vmax.f32 %v748, 0.0
  %v753 = vmax.f32 %v749, 0.0
  %754 = vmatprep.subr.mxu0 0.0
  %755 = vmatpush1.msra.mxu0 %v443
  %756 = vmatprep.subr.mxu0 0.0
  %757 = vmatpush1.msra.mxu0 %v444
  %758 = vmatprep.subr.mxu0 0.0
  %759 = vmatpush1.msra.mxu0 %v445
  %760 = vmatprep.subr.mxu0 0.0
  %761 = vmatpush1.msra.mxu0 %v446
  %762 = vmatprep.subr.mxu0 0.0
  %763 = vmatpush1.msra.mxu0 %v447
  %764 = vmatprep.subr.mxu0 0.0
  %765 = vmatpush1.msra.mxu0 %v448
  %766 = vmatprep.subr.mxu0 0.0
  %767 = vmatpush1.msra.mxu0 %v449
  %768 = vmatprep.subr.mxu0 0.0
  %769 = vmatpush1.msra.mxu0 %v450
  %770 = vmatprep.subr.mxu0 0.0
  %771 = vmatpush1.msra.mxu0 %v451
  %772 = vmatprep.subr.mxu0 0.0
  %773 = vmatpush1.msra.mxu0 %v452
  %774 = vmatprep.subr.mxu0 0.0
  %775 = vmatpush1.msra.mxu0 %v453
  %776 = vmatprep.subr.mxu0 0.0
  %777 = vmatpush1.msra.mxu0 %v454
  %778 = vmatprep.subr.mxu0 0.0
  %779 = vmatpush1.msra.mxu0 %v455
  %780 = vmatprep.subr.mxu0 0.0
  %781 = vmatpush1.msra.mxu0 %v456
  %782 = vmatprep.subr.mxu0 0.0
  %783 = vmatpush1.msra.mxu0 %v457
  %784 = vmatprep.subr.mxu0 0.0
  %785 = vmatpush1.msra.mxu0 %v458
  %786 = vmatprep.subr.mxu0 0.0
  %787 = vmatpush1.msra.mxu0 0.0
  %788 = vmatprep.subr.mxu0 0.0
  %789 = vmatpush1.msra.mxu0 0.0
  %790 = vmatprep.subr.mxu0 0.0
  %791 = vmatpush1.msra.mxu0 0.0
  %792 = vmatprep.subr.mxu0 0.0
  %793 = vmatpush1.msra.mxu0 0.0
  %794 = vmatprep.subr.mxu0 0.0
  %795 = vmatpush1.msra.mxu0 0.0
  %796 = vmatprep.subr.mxu0 0.0
  %797 = vmatpush1.msra.mxu0 0.0
  %798 = vmatprep.subr.mxu0 0.0
  %799 = vmatpush1.msra.mxu0 0.0
  %800 = vmatprep.subr.mxu0 0.0
  %801 = vmatpush1.msra.mxu0 0.0
  %802 = vmatprep.subr.mxu0 0.0
  %803 = vmatpush1.msra.mxu0 0.0
  %804 = vmatprep.subr.mxu0 0.0
  %805 = vmatpush1.msra.mxu0 0.0
  %806 = vmatprep.subr.mxu0 0.0
  %807 = vmatpush1.msra.mxu0 0.0
  %808 = vmatprep.subr.mxu0 0.0
  %809 = vmatpush1.msra.mxu0 0.0
  %810 = vmatprep.subr.mxu0 0.0
  %811 = vmatpush1.msra.mxu0 0.0
  %812 = vmatprep.subr.mxu0 0.0
  %813 = vmatpush1.msra.mxu0 0.0
  %814 = vmatprep.subr.mxu0 0.0
  %815 = vmatpush1.msra.mxu0 0.0
  %816 = vmatprep.subr.mxu0 0.0
  %817 = vmatpush1.msra.mxu0 0.0
  %818 = vmatprep.mubr.f32.mxu0 0.0
  %819 = vmatmul.mubr.f32.gmra.mrb[0].mxu0 %v750
  %v820 = vpop.f32.mrb[0].mxu0
  %v821 = vadd.f32 %v742, %v820
  %v822 = vpop.f32.mrb[0].mxu0
  %823 = vmatprep.mubr.f32.mxu0 0.0
  %824 = vmatmul.mubr.f32.gmra.mrb[0].mxu0 %v751
  %v825 = vpop.f32.mrb[0].mxu0
  %v826 = vadd.f32 %v743, %v825
  %v827 = vpop.f32.mrb[0].mxu0
  %828 = vmatprep.mubr.f32.mxu0 0.0
  %829 = vmatmul.mubr.f32.gmra.mrb[0].mxu0 %v752
  %v830 = vpop.f32.mrb[0].mxu0
  %v831 = vadd.f32 %v744, %v830
  %v832 = vpop.f32.mrb[0].mxu0
  %833 = vmatprep.mubr.f32.mxu0 0.0
  %834 = vmatmul.mubr.f32.gmra.mrb[0].mxu0 %v753
  %v835 = vpop.f32.mrb[0].mxu0
  %v836 = vadd.f32 %v745, %v835
  %v837 = vpop.f32.mrb[0].mxu0
  %838 = vdwg.mxu0
  %v839 = vmax.f32 %v821, 0.0
  %v840 = vmax.f32 %v826, 0.0
  %v841 = vmax.f32 %v831, 0.0
  %v842 = vmax.f32 %v836, 0.0
  %843 = vst [vmem:[%s9 + $0x8] sm:$0xff] %v839
  %844 = vst [vmem:[%s9 + $0x18] sm:$0xff] %v840
  %845 = vst [vmem:[%s9 + $0x28] sm:$0xff] %v841
  %846 = vst [vmem:[%s9 + $0x38] sm:$0xff] %v842
  // Predicated region
  $region38: #{subnetwork_up_stage.1} parent=0 // pred_check
    _
  $region39: #{subnetwork_up_stage.1} parent=0 // pred_check_branch
    %848 = sbr.rel (0) target = $region41
  $region40: #{subnetwork_up_stage.1} parent=0 // pred_region
    _
  $region41: #{subnetwork_up_stage.1} parent=0 // pred_fallthru
    _
  // Predicated region
  $region42: #{subnetwork_up_stage.1} parent=0 // pred_check
    _
  $region43: #{subnetwork_up_stage.1} parent=0 // pred_check_branch
    %850 = sbr.rel (0) target = $region45
  $region44: #{subnetwork_up_stage.1} parent=0 // pred_region
    _
  $region45: #{subnetwork_up_stage.1} parent=0 // pred_fallthru
    _

</llo_original>
